<compile_context>
chip_gen: v7x
topology: tpu7x:2x2x1
jax: 0.10.0
libtpu: 0.0.40
codegen_flags: <defaults>
</compile_context>

<pallas_src>
import jax
import jax.numpy as jnp
import numpy as np
from jax.experimental import pallas as pl
from jax.experimental.pallas import tpu as pltpu

BN_EPS = 1e-5


def _round_up(x, m):
    return ((x + m - 1) // m) * m


def _choose_b_tile(bs, n, target_rows=256, min_steps=2):
    """Batches per grid step: aim for >=target_rows matmul rows per step while
    keeping at least `min_steps` grid steps (v7x has 2 TensorCores)."""
    bt = min(bs, max(1, -(-target_rows // n)))
    if bs >= min_steps:
        bt = min(bt, bs // min_steps)
    bt = max(bt, 1)
    while bs % bt:
        bt -= 1
    return bt


def _point_embed_kernel(
    x_ref,       # (B_TILE, n, in_c)   current batch-tile of points (f32)
    w1a_ref,     # (in_c, oc)          conv1[0] with BN1 folded in (compute dtype)
    w1b_ref,     # (oc, oc)            conv1[3]  (its bias folded into b2a)
    w2a_ref,     # (2oc, 2oc)          conv2[0] with BN2 folded in
    w2b_ref,     # (2oc, out_c)        conv2[3]
    bias_ref,    # (3, 128) f32 packed biases: row0=b1a, row1=b2a, row2=b2b
    o_ref,       # (B_TILE, n, out_c)
):
    bt, n, in_c = x_ref.shape
    oc = w1a_ref.shape[1]
    out_c = o_ref.shape[-1]
    rows = bt * n
    cdt = w1a_ref.dtype           # matmul compute dtype (bf16 or f32)

    # Bias vregs loaded once per grid step (no per-batch re-slicing).
    b1a = bias_ref[0:1, 0:oc]                 # (1, oc)     f32
    b2a = bias_ref[1:2, 0:2 * oc]             # (1, 2oc)    f32
    b2b = bias_ref[2:3, 0:out_c]              # (1, out_c)  f32

    # Flatten (batch, point) rows so the MXU sees rows = B_TILE * n.
    x = x_ref[...].reshape(rows, in_c).astype(cdt)

    # ---- conv1: (Conv1d + folded BN) -> ReLU -> Conv1d (bias folded fwd) ----
    h = jnp.dot(x, w1a_ref[...], preferred_element_type=jnp.float32) + b1a
    h = jnp.maximum(h, 0.0).astype(cdt)
    feat = jnp.dot(h, w1b_ref[...], preferred_element_type=jnp.float32)  # (rows, oc) f32

    # ---- per-batch global max pool over points (segment max) ----
    feat3 = feat.reshape(bt, n, oc)
    feat_g = jnp.max(feat3, axis=1)                                      # (bt, oc) f32

    # ---- conv2 first layer: row-split of W2a instead of channel concat ----
    #   h2 = feat @ W2a_local + feat_global @ W2a_global + b2a
    local = jnp.dot(feat.astype(cdt), w2a_ref[oc:2 * oc, :],
                    preferred_element_type=jnp.float32)                  # (rows, 2oc)
    glob = jnp.dot(feat_g.astype(cdt), w2a_ref[0:oc, :],
                   preferred_element_type=jnp.float32) + b2a             # (bt, 2oc)
    h2 = local.reshape(bt, n, 2 * oc) + glob.reshape(bt, 1, 2 * oc)
    h2 = jnp.maximum(h2, 0.0).astype(cdt).reshape(rows, 2 * oc)

    # ---- conv2 second layer (unpadded out_c; masked store is cheaper than
    #      4x padded HBM traffic + a wrapper slice pass) ----
    out = jnp.dot(h2, w2b_ref[...], preferred_element_type=jnp.float32) + b2b
    o_ref[...] = out.reshape(bt, n, out_c).astype(o_ref.dtype)


def prepare_params(params, compute_dtype=jnp.bfloat16):
    """Host-side, one-time: fold eval-mode BN into conv weights (f32), fold
    b1b forward, transpose weights to (in, out), cast matmul operands to the
    MXU compute dtype, pack biases (kept f32)."""
    out_c, in_c = params["w1a"].shape
    oc2 = 2 * out_c

    # BN1 folded into conv1's first 1x1 conv.
    s1 = params["g1"] * jax.lax.rsqrt(params["rv1"] + BN_EPS)           # (oc,)
    w1a = params["w1a"].T * s1[None, :]                                 # (in_c, oc)
    b1a = (params["b1a"] - params["rm1"]) * s1 + params["be1"]          # (oc,)

    w1b = params["w1b"].T                                               # (oc, oc)

    # BN2 folded into conv2's first 1x1 conv.
    s2 = params["g2"] * jax.lax.rsqrt(params["rv2"] + BN_EPS)           # (2oc,)
    w2a = params["w2a"].T * s2[None, :]                                 # (2oc, 2oc)
    b2a = (params["b2a"] - params["rm2"]) * s2 + params["be2"]          # (2oc,)
    # conv1's second bias is constant over points (it shifts the per-batch max
    # by the same amount), so fold it forward through both halves of W2a.
    b2a = b2a + params["b1b"] @ (w2a[:out_c, :] + w2a[out_c:, :])       # (2oc,)

    w2b = params["w2b"].T                                               # (2oc, out_c)
    b2b = params["b2b"]                                                 # (out_c,)

    # Pack the three bias vectors into one small f32 array (one DMA).
    pw = _round_up(max(oc2, out_c), 128)
    biases = jnp.zeros((3, pw), jnp.float32)
    biases = biases.at[0, :out_c].set(b1a)
    biases = biases.at[1, :oc2].set(b2a)
    biases = biases.at[2, :out_c].set(b2b)

    return {
        "w1a": w1a.astype(compute_dtype),
        "w1b": w1b.astype(compute_dtype),
        "w2a": w2a.astype(compute_dtype),
        "w2b": w2b.astype(compute_dtype),
        "biases": biases,
        "out_c": out_c,
    }


def point_embed_forward(points, prep, b_tile=None):
    """points: (bs, n, in_c) float32 -> (bs, n, out_c) float32."""
    bs, n, in_c = points.shape
    out_c = prep["out_c"]
    if b_tile is None:
        b_tile = _choose_b_tile(bs, n)
    assert bs % b_tile == 0
    grid = (bs // b_tile,)

    weight_args = (prep["w1a"], prep["w1b"], prep["w2a"], prep["w2b"],
                   prep["biases"])

    in_specs = [pl.BlockSpec((b_tile, n, in_c), lambda b: (b, 0, 0))]
    # All weights are 2D; constant index map -> fetched once.
    in_specs += [pl.BlockSpec(a.shape, lambda b: (0, 0)) for a in weight_args]

    return pl.pallas_call(
        _point_embed_kernel,
        out_shape=jax.ShapeDtypeStruct((bs, n, out_c), points.dtype),
        grid_spec=pltpu.PrefetchScalarGridSpec(
            num_scalar_prefetch=0,
            grid=grid,
            in_specs=in_specs,
            out_specs=pl.BlockSpec((b_tile, n, out_c), lambda b: (b, 0, 0)),
        ),
        compiler_params=pltpu.CompilerParams(
            dimension_semantics=("parallel",),
            vmem_limit_bytes=32 * 1024 * 1024,
        ),
    )(points, *weight_args)


def point_embed_reference(points, params):
    """Pure-JAX reference mirroring the PyTorch forward (eval-mode BN)."""
    def bn(x, g, be, rm, rv):
        return (x - rm) * (g * jax.lax.rsqrt(rv + BN_EPS)) + be

    h = points @ params["w1a"].T + params["b1a"]
    h = jnp.maximum(bn(h, params["g1"], params["be1"],
                       params["rm1"], params["rv1"]), 0.0)
    feat = h @ params["w1b"].T + params["b1b"]                 # (bs, n, oc)
    fg = jnp.max(feat, axis=1, keepdims=True)                  # (bs, 1, oc)
    g = jnp.concatenate(
        [jnp.broadcast_to(fg, feat.shape), feat], axis=-1)     # (bs, n, 2oc)
    h2 = g @ params["w2a"].T + params["b2a"]
    h2 = jnp.maximum(bn(h2, params["g2"], params["be2"],
                        params["rm2"], params["rv2"]), 0.0)
    return h2 @ params["w2b"].T + params["b2b"]                # (bs, n, oc)


def make_params(key, in_c, out_c):
    ks = jax.random.split(key, 10)
    oc2 = 2 * out_c
    return {
        # conv1
        "w1a": jax.random.normal(ks[0], (out_c, in_c), jnp.float32) * 0.1,
        "b1a": jax.random.normal(ks[1], (out_c,), jnp.float32) * 0.05,
        "g1":  jnp.ones((out_c,), jnp.float32) * 1.1,
        "be1": jnp.full((out_c,), 0.02, jnp.float32),
        "rm1": jax.random.normal(ks[2], (out_c,), jnp.float32) * 0.01,
        "rv1": jnp.ones((out_c,), jnp.float32) * 0.9,
        "w1b": jax.random.normal(ks[3], (out_c, out_c), jnp.float32) * 0.1,
        "b1b": jax.random.normal(ks[4], (out_c,), jnp.float32) * 0.05,
        # conv2
        "w2a": jax.random.normal(ks[5], (oc2, oc2), jnp.float32) * 0.1,
        "b2a": jax.random.normal(ks[6], (oc2,), jnp.float32) * 0.05,
        "g2":  jnp.ones((oc2,), jnp.float32) * 0.95,
        "be2": jnp.full((oc2,), -0.01, jnp.float32),
        "rm2": jax.random.normal(ks[7], (oc2,), jnp.float32) * 0.01,
        "rv2": jnp.ones((oc2,), jnp.float32) * 1.05,
        "w2b": jax.random.normal(ks[8], (out_c, oc2), jnp.float32) * 0.1,
        "b2b": jax.random.normal(ks[9], (out_c,), jnp.float32) * 0.05,
    }


if __name__ == "__main__":
    # bs=4 so the batched path (B_TILE=2 batches/step) AND a >=2-step grid
    # (v7x: both TensorCores) are both exercised.
    bs, n, in_c, out_c = 4, 16, 4, 32

    key = jax.random.PRNGKey(0)
    k_pts, k_par = jax.random.split(key)
    points = jax.random.normal(k_pts, (bs, n, in_c), jnp.float32)
    params = make_params(k_par, in_c, out_c)
    ref = point_embed_reference(points, params)

    # f32 matmul path: tight numerical validation of the algebraic folds.
    prep_f32 = prepare_params(params, compute_dtype=jnp.float32)
    out_f32 = jax.block_until_ready(point_embed_forward(points, prep_f32))
    np.testing.assert_allclose(np.asarray(out_f32), np.asarray(ref),
                               rtol=1e-5, atol=1e-5)
    assert out_f32.shape == (bs, n, out_c)

    # bf16 matmul path (MXU-native operands, f32 accumulation): loose check.
    prep_bf16 = prepare_params(params, compute_dtype=jnp.bfloat16)
    out_bf16 = jax.block_until_ready(point_embed_forward(points, prep_bf16))
    np.testing.assert_allclose(np.asarray(out_bf16), np.asarray(ref),
                               rtol=5e-2, atol=5e-2)
    assert out_bf16.shape == (bs, n, out_c)

    print("KERNEL_OK")
</pallas_src>

<mosaic_0001>
module attributes {stable_mosaic.version = 11 : i64} {
  func.func @_point_embed_kernel(%arg0: i32, %arg1: memref<2x16x4xf32, #tpu.memory_space<vmem>>, %arg2: memref<4x32xf32, #tpu.memory_space<vmem>>, %arg3: memref<32x32xf32, #tpu.memory_space<vmem>>, %arg4: memref<64x64xf32, #tpu.memory_space<vmem>>, %arg5: memref<64x32xf32, #tpu.memory_space<vmem>>, %arg6: memref<3x128xf32, #tpu.memory_space<vmem>>, %arg7: memref<2x16x32xf32, #tpu.memory_space<vmem>>) attributes {dimension_semantics = [#tpu.dimension_semantics<parallel>], iteration_bounds = array<i64: 2>, scalar_prefetch = 0 : i64, scratch_operands = 0 : i64, tpu.core_type = #tpu.core_type<tc>, window_params = [{transform_indices = @transform_0, window_bounds = array<i64: 2, 16, 4>}, {pipeline_mode = #tpu.pipeline_mode<synchronous>, transform_indices = @transform_1, window_bounds = array<i64: 4, 32>}, {pipeline_mode = #tpu.pipeline_mode<synchronous>, transform_indices = @transform_2, window_bounds = array<i64: 32, 32>}, {pipeline_mode = #tpu.pipeline_mode<synchronous>, transform_indices = @transform_3, window_bounds = array<i64: 64, 64>}, {pipeline_mode = #tpu.pipeline_mode<synchronous>, transform_indices = @transform_4, window_bounds = array<i64: 64, 32>}, {pipeline_mode = #tpu.pipeline_mode<synchronous>, transform_indices = @transform_5, window_bounds = array<i64: 3, 128>}, {transform_indices = @transform_6, window_bounds = array<i64: 2, 16, 32>}]} {
    %c0 = arith.constant 0 : index
    %c0_0 = arith.constant 0 : index
    %0 = vector.load %arg6[%c0, %c0_0] : memref<3x128xf32, #tpu.memory_space<vmem>>, vector<1x32xf32>
    %c1 = arith.constant 1 : index
    %c0_1 = arith.constant 0 : index
    %1 = vector.load %arg6[%c1, %c0_1] : memref<3x128xf32, #tpu.memory_space<vmem>>, vector<1x64xf32>
    %c2 = arith.constant 2 : index
    %c0_2 = arith.constant 0 : index
    %2 = vector.load %arg6[%c2, %c0_2] : memref<3x128xf32, #tpu.memory_space<vmem>>, vector<1x32xf32>
    %c0_3 = arith.constant 0 : index
    %c0_4 = arith.constant 0 : index
    %c0_5 = arith.constant 0 : index
    %3 = vector.load %arg1[%c0_3, %c0_4, %c0_5] : memref<2x16x4xf32, #tpu.memory_space<vmem>>, vector<2x16x4xf32>
    %4 = vector.shape_cast %3 : vector<2x16x4xf32> to vector<32x4xf32>
    %c0_6 = arith.constant 0 : index
    %c0_7 = arith.constant 0 : index
    %5 = vector.load %arg2[%c0_6, %c0_7] : memref<4x32xf32, #tpu.memory_space<vmem>>, vector<4x32xf32>
    %cst = arith.constant dense<0.000000e+00> : vector<32x32xf32>
    %6 = tpu.matmul %4, %5, %cst {dimension_numbers = #tpu.dot_dimension_numbers<[1], [0], [0], [1], [0, 0, 1, 1], [], []>} : vector<32x4xf32>, vector<4x32xf32>, vector<32x32xf32> -> vector<32x32xf32>
    %7 = vector.broadcast %0 : vector<1x32xf32> to vector<32x32xf32>
    %8 = arith.addf %6, %7 : vector<32x32xf32>
    %cst_8 = arith.constant 0.000000e+00 : f32
    %9 = vector.broadcast %cst_8 : f32 to vector<32x32xf32>
    %10 = arith.maximumf %8, %9 : vector<32x32xf32>
    %c0_9 = arith.constant 0 : index
    %c0_10 = arith.constant 0 : index
    %11 = vector.load %arg3[%c0_9, %c0_10] : memref<32x32xf32, #tpu.memory_space<vmem>>, vector<32x32xf32>
    %cst_11 = arith.constant dense<0.000000e+00> : vector<32x32xf32>
    %12 = tpu.matmul %10, %11, %cst_11 {dimension_numbers = #tpu.dot_dimension_numbers<[1], [0], [0], [1], [0, 0, 1, 1], [], []>} : vector<32x32xf32>, vector<32x32xf32>, vector<32x32xf32> -> vector<32x32xf32>
    %13 = vector.shape_cast %12 : vector<32x32xf32> to vector<2x16x32xf32>
    %cst_12 = arith.constant dense<0xFF800000> : vector<2x32xf32>
    %14 = vector.multi_reduction <maximumf>, %13, %cst_12 [1] : vector<2x16x32xf32> to vector<2x32xf32>
    %c32 = arith.constant 32 : index
    %c0_13 = arith.constant 0 : index
    %15 = vector.load %arg4[%c32, %c0_13] : memref<64x64xf32, #tpu.memory_space<vmem>>, vector<32x64xf32>
    %cst_14 = arith.constant dense<0.000000e+00> : vector<32x64xf32>
    %16 = tpu.matmul %12, %15, %cst_14 {dimension_numbers = #tpu.dot_dimension_numbers<[1], [0], [0], [1], [0, 0, 1, 1], [], []>} : vector<32x32xf32>, vector<32x64xf32>, vector<32x64xf32> -> vector<32x64xf32>
    %c0_15 = arith.constant 0 : index
    %c0_16 = arith.constant 0 : index
    %17 = vector.load %arg4[%c0_15, %c0_16] : memref<64x64xf32, #tpu.memory_space<vmem>>, vector<32x64xf32>
    %cst_17 = arith.constant dense<0.000000e+00> : vector<2x64xf32>
    %18 = tpu.matmul %14, %17, %cst_17 {dimension_numbers = #tpu.dot_dimension_numbers<[1], [0], [0], [1], [0, 0, 1, 1], [], []>} : vector<2x32xf32>, vector<32x64xf32>, vector<2x64xf32> -> vector<2x64xf32>
    %19 = vector.broadcast %1 : vector<1x64xf32> to vector<2x64xf32>
    %20 = arith.addf %18, %19 : vector<2x64xf32>
    %21 = vector.shape_cast %16 : vector<32x64xf32> to vector<2x16x64xf32>
    %22 = vector.shape_cast %20 : vector<2x64xf32> to vector<2x1x64xf32>
    %23 = vector.broadcast %22 : vector<2x1x64xf32> to vector<2x16x64xf32>
    %24 = arith.addf %21, %23 : vector<2x16x64xf32>
    %cst_18 = arith.constant 0.000000e+00 : f32
    %25 = vector.broadcast %cst_18 : f32 to vector<2x16x64xf32>
    %26 = arith.maximumf %24, %25 : vector<2x16x64xf32>
    %27 = vector.shape_cast %26 : vector<2x16x64xf32> to vector<32x64xf32>
    %c0_19 = arith.constant 0 : index
    %c0_20 = arith.constant 0 : index
    %28 = vector.load %arg5[%c0_19, %c0_20] : memref<64x32xf32, #tpu.memory_space<vmem>>, vector<64x32xf32>
    %cst_21 = arith.constant dense<0.000000e+00> : vector<32x32xf32>
    %29 = tpu.matmul %27, %28, %cst_21 {dimension_numbers = #tpu.dot_dimension_numbers<[1], [0], [0], [1], [0, 0, 1, 1], [], []>} : vector<32x64xf32>, vector<64x32xf32>, vector<32x32xf32> -> vector<32x32xf32>
    %30 = vector.broadcast %2 : vector<1x32xf32> to vector<32x32xf32>
    %31 = arith.addf %29, %30 : vector<32x32xf32>
    %32 = vector.shape_cast %31 : vector<32x32xf32> to vector<2x16x32xf32>
    %c0_22 = arith.constant 0 : index
    %c0_23 = arith.constant 0 : index
    %c0_24 = arith.constant 0 : index
    %33 = vector.load %arg7[%c0_22, %c0_23, %c0_24] : memref<2x16x32xf32, #tpu.memory_space<vmem>>, vector<2x16x32xf32>
    tpu.vector_store %arg7[%c0_22, %c0_23, %c0_24], %32 {strides = array<i32>} : memref<2x16x32xf32, #tpu.memory_space<vmem>>, vector<2x16x32xf32>,
    return
  }
  func.func @transform_0(%arg0: i32) -> (i32, i32, i32) {
    %c0_i32 = arith.constant 0 : i32
    %c0_i32_0 = arith.constant 0 : i32
    %c0_i32_1 = arith.constant 0 : i32
    return %arg0, %c0_i32, %c0_i32_0 : i32, i32, i32
  }
  func.func @transform_1(%arg0: i32) -> (i32, i32) {
    %c0_i32 = arith.constant 0 : i32
    %c0_i32_0 = arith.constant 0 : i32
    %c0_i32_1 = arith.constant 0 : i32
    return %c0_i32, %c0_i32_0 : i32, i32
  }
  func.func @transform_2(%arg0: i32) -> (i32, i32) {
    %c0_i32 = arith.constant 0 : i32
    %c0_i32_0 = arith.constant 0 : i32
    %c0_i32_1 = arith.constant 0 : i32
    return %c0_i32, %c0_i32_0 : i32, i32
  }
  func.func @transform_3(%arg0: i32) -> (i32, i32) {
    %c0_i32 = arith.constant 0 : i32
    %c0_i32_0 = arith.constant 0 : i32
    %c0_i32_1 = arith.constant 0 : i32
    return %c0_i32, %c0_i32_0 : i32, i32
  }
  func.func @transform_4(%arg0: i32) -> (i32, i32) {
    %c0_i32 = arith.constant 0 : i32
    %c0_i32_0 = arith.constant 0 : i32
    %c0_i32_1 = arith.constant 0 : i32
    return %c0_i32, %c0_i32_0 : i32, i32
  }
  func.func @transform_5(%arg0: i32) -> (i32, i32) {
    %c0_i32 = arith.constant 0 : i32
    %c0_i32_0 = arith.constant 0 : i32
    %c0_i32_1 = arith.constant 0 : i32
    return %c0_i32, %c0_i32_0 : i32, i32
  }
  func.func @transform_6(%arg0: i32) -> (i32, i32, i32) {
    %c0_i32 = arith.constant 0 : i32
    %c0_i32_0 = arith.constant 0 : i32
    %c0_i32_1 = arith.constant 0 : i32
    return %arg0, %c0_i32, %c0_i32_0 : i32, i32, i32
  }
}

</mosaic_0001>

<llo_original>
// kernel: tpu_custom_call.1
$region0: #{tpu_custom_call.1}
  #allocation0 [shape = 'u32[]', space=smem, size = 0x4, offset = 0x4, fixed_abs, tag = 'smem constant byte address 0x4 - core index']
  #allocation1 [shape = 'u32[144,128]{1,0:T(1,128)}', space=vmem, size = 0x12000, scoped, tag = 'internal scratch']
  %s0 = inlined_call_operand.vmem [shape: f32[4,16,4], index: 0, kind: input, shape index: {}]
  %s1 = inlined_call_operand.vmem [shape: f32[4,32], index: 1, kind: input, shape index: {}]
  %s2 = inlined_call_operand.vmem [shape: f32[32,32], index: 2, kind: input, shape index: {}]
  %s3 = inlined_call_operand.vmem [shape: f32[64,64], index: 3, kind: input, shape index: {}]
  %s4 = inlined_call_operand.vmem [shape: f32[64,32], index: 4, kind: input, shape index: {}]
  %s5 = inlined_call_operand.vmem [shape: f32[3,128], index: 5, kind: input, shape index: {}]
  %s6 = inlined_call_operand.hbm [shape: f32[4,16,32], index: 6, kind: output, shape index: {}]
  %s7 = sld [smem:[#allocation0]]
  $region57: #{tpu_custom_call.1} parent=0
    _
  %s9 = ssub.s32 1, %s7
  %s10 = scalar_select 0, %s9, %s7
  $region1: #{tpu_custom_call.1} parent=0
    #allocation2 [shape = 'u8[32768]{0}', space=vmem, size = 0x8000, scoped, tag = 'output window, operand 0']
    #allocation3 [shape = 's32[2]{0}', space=sflag, size = 0x8, scoped, tag = 'scoped memory for tpu_custom_call.1']
    %11 = vsyncpa [#allocation3], 0
    %s12 = scalar_lea.sflag [#allocation3], 1
    %13 = vsyncpa %s12, 0
    loop: start=0, step=1, limit=4
    $region2: #{tpu_custom_call.1} parent=1 // loop_pre_header
      _
    $region3: #{tpu_custom_call.1} parent=1 // loop_header
      %s15 = sphi 0, %s19
      %p16 = scmp.ge.s32.totalorder %s15, 4
      %s25 = sphi 0, %s27
      %s28 = sphi 0, %s25
      %s29 = sphi 0, %s28
      %s45 = sphi 0, %s29
      %s49 = sphi 0, %s49
      %s51 = sphi 0, %s49
      %s52 = sphi 0, %s51
      %s66 = sphi 0, %s52
      %s70 = sphi 0, %s70
      %s72 = sphi 0, %s70
      %s73 = sphi 0, %s72
      %s87 = sphi 0, %s73
      %s91 = sphi 0, %s91
      %s93 = sphi 0, %s91
      %s94 = sphi 0, %s93
      %s108 = sphi 0, %s94
      %s112 = sphi 0, %s112
      %s114 = sphi 0, %s112
      %s115 = sphi 0, %s114
      %s129 = sphi 0, %s115
      %s133 = sphi 0, %s133
      %s135 = sphi 0, %s133
      %s136 = sphi 0, %s135
      %s150 = sphi 0, %s136
      %s156 = sphi 0, %s158
      %s159 = sphi 0, %s156
      %s160 = sphi 0, %s159
      %s176 = sphi 0, %s160
    $region4: #{tpu_custom_call.1} parent=1 // loop_header_branch
      %18 = sbr.rel (%p16) target = $region8
    $region5: #{tpu_custom_call.1} parent=1 // loop_body
      %s20 = ssub.s32 %s15, 1
      %s21 = ssub.s32 %s15, 2
      %s22 = sadd.s32 %s15, 1
      %s23 = ssub.s32 %s15, %s22
      %p24 = scmp.eq.s32.totalorder %s23, 0
      %s26 = sadd.s32 %s25, 1
      %s27 = scalar_select %p24, %s25, %s26
      %p30 = pneg %p24
      %p31 = scmp.eq.s32.totalorder %s15, 1
      %p32 = por %p30, %p31
      %p33 = scmp.ne.s32.totalorder %s25, %s28
      %p34 = scmp.eq.s32.totalorder %s15, 0
      %p35 = por %p33, %p34
      %p36 = scmp.ne.s32.totalorder %s25, %s28
      %p37 = scmp.eq.s32.totalorder %s20, 1
      %p38 = por %p36, %p37
      %p39 = scmp.ne.s32.totalorder %s28, %s29
      %p40 = scmp.eq.s32.totalorder %s20, 0
      %p41 = por %p39, %p40
      %p42 = scmp.ne.s32.totalorder %s28, %s29
      %p43 = scmp.eq.s32.totalorder %s21, 1
      %p44 = por %p42, %p43
      %p46 = scmp.ne.s32.totalorder %s29, %s45
      %p47 = scmp.eq.s32.totalorder %s21, 0
      %p48 = por %p46, %p47
      %s50 = sadd.s32 %s49, 1
      %p53 = scmp.eq.s32.totalorder %s15, 1
      %p54 = scmp.ne.s32.totalorder %s49, %s51
      %p55 = scmp.eq.s32.totalorder %s15, 0
      %p56 = por %p54, %p55
      %p57 = scmp.ne.s32.totalorder %s49, %s51
      %p58 = scmp.eq.s32.totalorder %s20, 1
      %p59 = por %p57, %p58
      %p60 = scmp.ne.s32.totalorder %s51, %s52
      %p61 = scmp.eq.s32.totalorder %s20, 0
      %p62 = por %p60, %p61
      %p63 = scmp.ne.s32.totalorder %s51, %s52
      %p64 = scmp.eq.s32.totalorder %s21, 1
      %p65 = por %p63, %p64
      %p67 = scmp.ne.s32.totalorder %s52, %s66
      %p68 = scmp.eq.s32.totalorder %s21, 0
      %p69 = por %p67, %p68
      %s71 = sadd.s32 %s70, 1
      %p74 = scmp.eq.s32.totalorder %s15, 1
      %p75 = scmp.ne.s32.totalorder %s70, %s72
      %p76 = scmp.eq.s32.totalorder %s15, 0
      %p77 = por %p75, %p76
      %p78 = scmp.ne.s32.totalorder %s70, %s72
      %p79 = scmp.eq.s32.totalorder %s20, 1
      %p80 = por %p78, %p79
      %p81 = scmp.ne.s32.totalorder %s72, %s73
      %p82 = scmp.eq.s32.totalorder %s20, 0
      %p83 = por %p81, %p82
      %p84 = scmp.ne.s32.totalorder %s72, %s73
      %p85 = scmp.eq.s32.totalorder %s21, 1
      %p86 = por %p84, %p85
      %p88 = scmp.ne.s32.totalorder %s73, %s87
      %p89 = scmp.eq.s32.totalorder %s21, 0
      %p90 = por %p88, %p89
      %s92 = sadd.s32 %s91, 1
      %p95 = scmp.eq.s32.totalorder %s15, 1
      %p96 = scmp.ne.s32.totalorder %s91, %s93
      %p97 = scmp.eq.s32.totalorder %s15, 0
      %p98 = por %p96, %p97
      %p99 = scmp.ne.s32.totalorder %s91, %s93
      %p100 = scmp.eq.s32.totalorder %s20, 1
      %p101 = por %p99, %p100
      %p102 = scmp.ne.s32.totalorder %s93, %s94
      %p103 = scmp.eq.s32.totalorder %s20, 0
      %p104 = por %p102, %p103
      %p105 = scmp.ne.s32.totalorder %s93, %s94
      %p106 = scmp.eq.s32.totalorder %s21, 1
      %p107 = por %p105, %p106
      %p109 = scmp.ne.s32.totalorder %s94, %s108
      %p110 = scmp.eq.s32.totalorder %s21, 0
      %p111 = por %p109, %p110
      %s113 = sadd.s32 %s112, 1
      %p116 = scmp.eq.s32.totalorder %s15, 1
      %p117 = scmp.ne.s32.totalorder %s112, %s114
      %p118 = scmp.eq.s32.totalorder %s15, 0
      %p119 = por %p117, %p118
      %p120 = scmp.ne.s32.totalorder %s112, %s114
      %p121 = scmp.eq.s32.totalorder %s20, 1
      %p122 = por %p120, %p121
      %p123 = scmp.ne.s32.totalorder %s114, %s115
      %p124 = scmp.eq.s32.totalorder %s20, 0
      %p125 = por %p123, %p124
      %p126 = scmp.ne.s32.totalorder %s114, %s115
      %p127 = scmp.eq.s32.totalorder %s21, 1
      %p128 = por %p126, %p127
      %p130 = scmp.ne.s32.totalorder %s115, %s129
      %p131 = scmp.eq.s32.totalorder %s21, 0
      %p132 = por %p130, %p131
      %s134 = sadd.s32 %s133, 1
      %p137 = scmp.eq.s32.totalorder %s15, 1
      %p138 = scmp.ne.s32.totalorder %s133, %s135
      %p139 = scmp.eq.s32.totalorder %s15, 0
      %p140 = por %p138, %p139
      %p141 = scmp.ne.s32.totalorder %s133, %s135
      %p142 = scmp.eq.s32.totalorder %s20, 1
      %p143 = por %p141, %p142
      %p144 = scmp.ne.s32.totalorder %s135, %s136
      %p145 = scmp.eq.s32.totalorder %s20, 0
      %p146 = por %p144, %p145
      %p147 = scmp.ne.s32.totalorder %s135, %s136
      %p148 = scmp.eq.s32.totalorder %s21, 1
      %p149 = por %p147, %p148
      %p151 = scmp.ne.s32.totalorder %s136, %s150
      %p152 = scmp.eq.s32.totalorder %s21, 0
      %p153 = por %p151, %p152
      %s154 = ssub.s32 %s15, %s22
      %p155 = scmp.eq.s32.totalorder %s154, 0
      %s157 = sadd.s32 %s156, 1
      %s158 = scalar_select %p155, %s156, %s157
      %p161 = pneg %p155
      %p162 = scmp.eq.s32.totalorder %s15, 1
      %p163 = por %p161, %p162
      %p164 = scmp.ne.s32.totalorder %s156, %s159
      %p165 = scmp.eq.s32.totalorder %s15, 0
      %p166 = por %p164, %p165
      %p167 = scmp.ne.s32.totalorder %s156, %s159
      %p168 = scmp.eq.s32.totalorder %s20, 1
      %p169 = por %p167, %p168
      %p170 = scmp.ne.s32.totalorder %s159, %s160
      %p171 = scmp.eq.s32.totalorder %s20, 0
      %p172 = por %p170, %p171
      %p173 = scmp.ne.s32.totalorder %s159, %s160
      %p174 = scmp.eq.s32.totalorder %s21, 1
      %p175 = por %p173, %p174
      %p177 = scmp.ne.s32.totalorder %s160, %s176
      %p178 = scmp.eq.s32.totalorder %s21, 0
      %p179 = por %p177, %p178
      %p180 = scmp.le.s32.totalorder 1, %s15
      %p181 = scmp.lt.s32.totalorder %s15, 3
      %p182 = pnand %p180, %p181
      %p183 = pneg %p182
      // Predicated region
      $region9: #{tpu_custom_call.1} parent=5 // pred_check
        _
      $region10: #{tpu_custom_call.1} parent=5 // pred_check_branch
        %185 = sbr.rel (%p182) target = $region12
      $region11: #{tpu_custom_call.1} parent=5 // pred_region
        %s186 = ssub.s32 %s15, 1
        // Predicated region
        $region13: #{tpu_custom_call.1} parent=11 // pred_check
          %p187 = pneg %p62
        $region14: #{tpu_custom_call.1} parent=11 // pred_check_branch
          %189 = sbr.rel (%p187) target = $region16
        $region15: #{tpu_custom_call.1} parent=11 // pred_region
          _
        $region16: #{tpu_custom_call.1} parent=11 // pred_fallthru
          _
        // Predicated region
        $region17: #{tpu_custom_call.1} parent=11 // pred_check
          %p190 = pneg %p83
        $region18: #{tpu_custom_call.1} parent=11 // pred_check_branch
          %192 = sbr.rel (%p190) target = $region20
        $region19: #{tpu_custom_call.1} parent=11 // pred_region
          _
        $region20: #{tpu_custom_call.1} parent=11 // pred_fallthru
          _
        // Predicated region
        $region21: #{tpu_custom_call.1} parent=11 // pred_check
          %p193 = pneg %p104
        $region22: #{tpu_custom_call.1} parent=11 // pred_check_branch
          %195 = sbr.rel (%p193) target = $region24
        $region23: #{tpu_custom_call.1} parent=11 // pred_region
          _
        $region24: #{tpu_custom_call.1} parent=11 // pred_fallthru
          _
        // Predicated region
        $region25: #{tpu_custom_call.1} parent=11 // pred_check
          %p196 = pneg %p125
        $region26: #{tpu_custom_call.1} parent=11 // pred_check_branch
          %198 = sbr.rel (%p196) target = $region28
        $region27: #{tpu_custom_call.1} parent=11 // pred_region
          _
        $region28: #{tpu_custom_call.1} parent=11 // pred_fallthru
          _
        // Predicated region
        $region29: #{tpu_custom_call.1} parent=11 // pred_check
          %p199 = pneg %p146
        $region30: #{tpu_custom_call.1} parent=11 // pred_check_branch
          %201 = sbr.rel (%p199) target = $region32
        $region31: #{tpu_custom_call.1} parent=11 // pred_region
          _
        $region32: #{tpu_custom_call.1} parent=11 // pred_fallthru
          _
      $region12: #{tpu_custom_call.1} parent=5 // pred_fallthru
        _
      %p202 = scmp.lt.s32.totalorder %s15, 2
      // Predicated region
      $region33: #{tpu_custom_call.1} parent=5 // pred_check
        %p203 = pneg %p202
      $region34: #{tpu_custom_call.1} parent=5 // pred_check_branch
        %205 = sbr.rel (%p203) target = $region36
      $region35: #{tpu_custom_call.1} parent=5 // pred_region
        // Predicated region
        $region37: #{tpu_custom_call.1} parent=35 // pred_check
          %p206 = pneg %p35
        $region38: #{tpu_custom_call.1} parent=35 // pred_check_branch
          %208 = sbr.rel (%p206) target = $region40
        $region39: #{tpu_custom_call.1} parent=35 // pred_region
          %s209 = smul.u32 2, %s15
          %p210 = scmp.lt.s32.totalorder %s209, 3
          %s211 = scalar_select %p210, %s209, 3
          %s212 = smul.addr %s211, 2
          %s213 = smul.addr %s212, 8
          %s214 = scalar_lea.vmem %s0, %s213
          %s215 = smul.u32 2, %s15
        $region40: #{tpu_custom_call.1} parent=35 // pred_fallthru
          _
      $region36: #{tpu_custom_call.1} parent=5 // pred_fallthru
        _
      %p216 = scmp.le.s32.totalorder 1, %s15
      %p217 = scmp.lt.s32.totalorder %s15, 3
      %p218 = pnand %p216, %p217
      %p219 = pneg %p218
      // Predicated region
      $region41: #{tpu_custom_call.1} parent=5 // pred_check
        _
      $region42: #{tpu_custom_call.1} parent=5 // pred_check_branch
        %221 = sbr.rel (%p218) target = $region44
      $region43: #{tpu_custom_call.1} parent=5 // pred_region
        %s222 = ssub.s32 %s15, 1
        %s223 = smul.u32 2, %s20
        %p224 = scmp.lt.s32.totalorder %s223, 3
        %s225 = scalar_select %p224, %s223, 3
        %s226 = smul.addr %s225, 2
        %s227 = smul.addr %s226, 8
        %s228 = scalar_lea.vmem %s0, %s227
        %p229 = pneg %p41
        %p230 = pneg %p38
        %p231 = pneg %p62
        %p232 = pneg %p59
        %p233 = pneg %p83
        %p234 = pneg %p80
        %p235 = pneg %p104
        %p236 = pneg %p101
        %p237 = pneg %p125
        %p238 = pneg %p122
        %p239 = pneg %p146
        %p240 = pneg %p143
        %p241 = pneg %p172
        %p242 = pneg %p169
        %s243 = sand.u32 %s159, 1
        %s244 = scalar_lea.sflag [#allocation3], %s243
        %s245 = sand.u32 %s159, 1
        %s246 = smul.addr %s245, 32
        %s247 = scalar_lea.vmem [#allocation2], %s246
        %s248 = smul.u32 2, %s20
        %p249 = scmp.lt.s32.totalorder %s248, 3
        %s250 = scalar_select %p249, %s248, 3
        %s251 = smul.addr %s250, 2
        %s252 = smul.addr %s251, 8
        %s253 = scalar_lea.vmem %s0, %s252
        %s254 = smul.u32 2, %s20
        %s255 = smul.u32 2, %s20
        %v256 = vld [vmem:[%s5] sm:$0x1]
        %v257 = vld [vmem:[%s5 + $0x1] sm:$0x1]
        %v258 = vld [vmem:[%s5 + $0x2] sm:$0x1]
        %v259 = vld [vmem:[%s253] sm:$0xff]
        %v260 = vld [vmem:[%s253 + $0x8] sm:$0xff]
        %v261 = vld [vmem:[%s253 + $0x10] sm:$0xff]
        %v262 = vld [vmem:[%s253 + $0x18] sm:$0xff]
        %v263 = vld [vmem:[%s1] sm:$0xf]
        %v264 = vlaneseq
        %v265 = vshrl.u32 %v264, 7
        %v266 = vsub.s32 0, %v265
        %v267 = vrot.slane %v256, %v266
        %vm268 = vcmask 31744
        %v270 = vsel %vm268, %v259, 0
        %v273 = vsel %vm268, %v260, 0
        %v276 = vsel %vm268, %v261, 0
        %v279 = vsel %vm268, %v262, 0
        %vm281 = vcmask 1043456
        %v283 = vsel %vm281, %v263, 0
        %285 = vmatprep.subr.mxu0 0.0
        %286 = vmatpush1.msra.mxu0 %v283
        %287 = vmatprep.subr.mxu0 0.0
        %288 = vmatpush1.msra.mxu0 0.0
        %289 = vmatprep.subr.mxu0 0.0
        %290 = vmatpush1.msra.mxu0 0.0
        %291 = vmatprep.subr.mxu0 0.0
        %292 = vmatpush1.msra.mxu0 0.0
        %293 = vmatprep.subr.mxu0 0.0
        %294 = vmatpush1.msra.mxu0 0.0
        %295 = vmatprep.subr.mxu0 0.0
        %296 = vmatpush1.msra.mxu0 0.0
        %297 = vmatprep.subr.mxu0 0.0
        %298 = vmatpush1.msra.mxu0 0.0
        %299 = vmatprep.subr.mxu0 0.0
        %300 = vmatpush1.msra.mxu0 0.0
        %301 = vmatprep.subr.mxu0 0.0
        %302 = vmatpush1.msra.mxu0 0.0
        %303 = vmatprep.subr.mxu0 0.0
        %304 = vmatpush1.msra.mxu0 0.0
        %305 = vmatprep.subr.mxu0 0.0
        %306 = vmatpush1.msra.mxu0 0.0
        %307 = vmatprep.subr.mxu0 0.0
        %308 = vmatpush1.msra.mxu0 0.0
        %309 = vmatprep.subr.mxu0 0.0
        %310 = vmatpush1.msra.mxu0 0.0
        %311 = vmatprep.subr.mxu0 0.0
        %312 = vmatpush1.msra.mxu0 0.0
        %313 = vmatprep.subr.mxu0 0.0
        %314 = vmatpush1.msra.mxu0 0.0
        %315 = vmatprep.subr.mxu0 0.0
        %316 = vmatpush1.msra.mxu0 0.0
        %317 = vmatprep.subr.mxu0 0.0
        %318 = vmatpush1.msra.mxu0 0.0
        %319 = vmatprep.subr.mxu0 0.0
        %320 = vmatpush1.msra.mxu0 0.0
        %321 = vmatprep.subr.mxu0 0.0
        %322 = vmatpush1.msra.mxu0 0.0
        %323 = vmatprep.subr.mxu0 0.0
        %324 = vmatpush1.msra.mxu0 0.0
        %325 = vmatprep.subr.mxu0 0.0
        %326 = vmatpush1.msra.mxu0 0.0
        %327 = vmatprep.subr.mxu0 0.0
        %328 = vmatpush1.msra.mxu0 0.0
        %329 = vmatprep.subr.mxu0 0.0
        %330 = vmatpush1.msra.mxu0 0.0
        %331 = vmatprep.subr.mxu0 0.0
        %332 = vmatpush1.msra.mxu0 0.0
        %333 = vmatprep.subr.mxu0 0.0
        %334 = vmatpush1.msra.mxu0 0.0
        %335 = vmatprep.subr.mxu0 0.0
        %336 = vmatpush1.msra.mxu0 0.0
        %337 = vmatprep.subr.mxu0 0.0
        %338 = vmatpush1.msra.mxu0 0.0
        %339 = vmatprep.subr.mxu0 0.0
        %340 = vmatpush1.msra.mxu0 0.0
        %341 = vmatprep.subr.mxu0 0.0
        %342 = vmatpush1.msra.mxu0 0.0
        %343 = vmatprep.subr.mxu0 0.0
        %344 = vmatpush1.msra.mxu0 0.0
        %345 = vmatprep.subr.mxu0 0.0
        %346 = vmatpush1.msra.mxu0 0.0
        %347 = vmatprep.subr.mxu0 0.0
        %348 = vmatpush1.msra.mxu0 0.0
        %349 = vmatprep.mubr.f32.mxu0 0.0
        %350 = vmatmul.mubr.f32.gmra.mrb[0].mxu0 %v270
        %v351 = vpop.f32.mrb[0].mxu0
        %v352 = vadd.f32 %v267, %v351
        %v353 = vpop.f32.mrb[0].mxu0
        %354 = vmatprep.mubr.f32.mxu0 0.0
        %355 = vmatmul.mubr.f32.gmra.mrb[0].mxu0 %v273
        %v356 = vpop.f32.mrb[0].mxu0
        %v357 = vadd.f32 %v267, %v356
        %v358 = vpop.f32.mrb[0].mxu0
        %359 = vmatprep.mubr.f32.mxu0 0.0
        %360 = vmatmul.mubr.f32.gmra.mrb[0].mxu0 %v276
        %v361 = vpop.f32.mrb[0].mxu0
        %v362 = vadd.f32 %v267, %v361
        %v363 = vpop.f32.mrb[0].mxu0
        %364 = vmatprep.mubr.f32.mxu0 0.0
        %365 = vmatmul.mubr.f32.gmra.mrb[0].mxu0 %v279
        %v366 = vpop.f32.mrb[0].mxu0
        %v367 = vadd.f32 %v267, %v366
        %v368 = vpop.f32.mrb[0].mxu0
        %369 = vdwg.mxu0
        %v370 = vmax.f32 %v352, 0.0
        %v371 = vmax.f32 %v357, 0.0
        %v372 = vmax.f32 %v362, 0.0
        %v373 = vmax.f32 %v367, 0.0
        %v374 = vld [vmem:[%s2] sm:$0xff]
        %v375 = vld [vmem:[%s2 + $0x8] sm:$0xff]
        %v376 = vld [vmem:[%s2 + $0x10] sm:$0xff]
        %v377 = vld [vmem:[%s2 + $0x18] sm:$0xff]
        %vm378 = vcmask 261120
        %v380 = vsel %vm378, %v370, 0
        %v383 = vsel %vm378, %v371, 0
        %v386 = vsel %vm378, %v372, 0
        %v389 = vsel %vm378, %v373, 0
        %391 = vmatprep.subr.mxu0 0.0
        %392 = vmatpush1.msra.mxu0 %v374
        %393 = vmatprep.subr.mxu0 0.0
        %394 = vmatpush1.msra.mxu0 %v375
        %395 = vmatprep.subr.mxu0 0.0
        %396 = vmatpush1.msra.mxu0 %v376
        %397 = vmatprep.subr.mxu0 0.0
        %398 = vmatpush1.msra.mxu0 %v377
        %399 = vmatprep.subr.mxu0 0.0
        %400 = vmatpush1.msra.mxu0 0.0
        %401 = vmatprep.subr.mxu0 0.0
        %402 = vmatpush1.msra.mxu0 0.0
        %403 = vmatprep.subr.mxu0 0.0
        %404 = vmatpush1.msra.mxu0 0.0
        %405 = vmatprep.subr.mxu0 0.0
        %406 = vmatpush1.msra.mxu0 0.0
        %407 = vmatprep.subr.mxu0 0.0
        %408 = vmatpush1.msra.mxu0 0.0
        %409 = vmatprep.subr.mxu0 0.0
        %410 = vmatpush1.msra.mxu0 0.0
        %411 = vmatprep.subr.mxu0 0.0
        %412 = vmatpush1.msra.mxu0 0.0
        %413 = vmatprep.subr.mxu0 0.0
        %414 = vmatpush1.msra.mxu0 0.0
        %415 = vmatprep.subr.mxu0 0.0
        %416 = vmatpush1.msra.mxu0 0.0
        %417 = vmatprep.subr.mxu0 0.0
        %418 = vmatpush1.msra.mxu0 0.0
        %419 = vmatprep.subr.mxu0 0.0
        %420 = vmatpush1.msra.mxu0 0.0
        %421 = vmatprep.subr.mxu0 0.0
        %422 = vmatpush1.msra.mxu0 0.0
        %423 = vmatprep.subr.mxu0 0.0
        %424 = vmatpush1.msra.mxu0 0.0
        %425 = vmatprep.subr.mxu0 0.0
        %426 = vmatpush1.msra.mxu0 0.0
        %427 = vmatprep.subr.mxu0 0.0
        %428 = vmatpush1.msra.mxu0 0.0
        %429 = vmatprep.subr.mxu0 0.0
        %430 = vmatpush1.msra.mxu0 0.0
        %431 = vmatprep.subr.mxu0 0.0
        %432 = vmatpush1.msra.mxu0 0.0
        %433 = vmatprep.subr.mxu0 0.0
        %434 = vmatpush1.msra.mxu0 0.0
        %435 = vmatprep.subr.mxu0 0.0
        %436 = vmatpush1.msra.mxu0 0.0
        %437 = vmatprep.subr.mxu0 0.0
        %438 = vmatpush1.msra.mxu0 0.0
        %439 = vmatprep.subr.mxu0 0.0
        %440 = vmatpush1.msra.mxu0 0.0
        %441 = vmatprep.subr.mxu0 0.0
        %442 = vmatpush1.msra.mxu0 0.0
        %443 = vmatprep.subr.mxu0 0.0
        %444 = vmatpush1.msra.mxu0 0.0
        %445 = vmatprep.subr.mxu0 0.0
        %446 = vmatpush1.msra.mxu0 0.0
        %447 = vmatprep.subr.mxu0 0.0
        %448 = vmatpush1.msra.mxu0 0.0
        %449 = vmatprep.subr.mxu0 0.0
        %450 = vmatpush1.msra.mxu0 0.0
        %451 = vmatprep.subr.mxu0 0.0
        %452 = vmatpush1.msra.mxu0 0.0
        %453 = vmatprep.subr.mxu0 0.0
        %454 = vmatpush1.msra.mxu0 0.0
        %455 = vmatprep.mubr.f32.mxu0 0.0
        %456 = vmatmul.mubr.f32.gmra.mrb[0].mxu0 %v380
        %v457 = vpop.f32.mrb[0].mxu0
        %v458 = vadd.f32 0.0, %v457
        %v459 = vpop.f32.mrb[0].mxu0
        %460 = vmatprep.mubr.f32.mxu0 0.0
        %461 = vmatmul.mubr.f32.gmra.mrb[0].mxu0 %v383
        %v462 = vpop.f32.mrb[0].mxu0
        %v463 = vadd.f32 0.0, %v462
        %v464 = vpop.f32.mrb[0].mxu0
        %465 = vmatprep.mubr.f32.mxu0 0.0
        %466 = vmatmul.mubr.f32.gmra.mrb[0].mxu0 %v386
        %v467 = vpop.f32.mrb[0].mxu0
        %v468 = vadd.f32 0.0, %v467
        %v469 = vpop.f32.mrb[0].mxu0
        %470 = vmatprep.mubr.f32.mxu0 0.0
        %471 = vmatmul.mubr.f32.gmra.mrb[0].mxu0 %v389
        %v472 = vpop.f32.mrb[0].mxu0
        %v473 = vadd.f32 0.0, %v472
        %v474 = vpop.f32.mrb[0].mxu0
        %475 = vdwg.mxu0
        %v476 = vsel %vm378, %v458, -inf
        %v477 = vsel %vm378, %v463, -inf
        %v478 = vmax.f32 %v476, %v477
        %v479 = vrot.slane %v478, 4
        %v480 = vmax.f32 %v478, %v479
        %v481 = vrot.slane %v480, 2
        %v482 = vmax.f32 %v480, %v481
        %v483 = vrot.slane %v482, 1
        %v484 = vmax.f32 %v482, %v483
        %v485 = vsel %vm378, %v468, -inf
        %v486 = vsel %vm378, %v473, -inf
        %v487 = vmax.f32 %v485, %v486
        %v488 = vrot.slane %v487, 4
        %v489 = vmax.f32 %v487, %v488
        %v490 = vrot.slane %v489, 2
        %v491 = vmax.f32 %v489, %v490
        %v492 = vrot.slane %v491, 1
        %v493 = vmax.f32 %v491, %v492
        %v494 = vld [vmem:[%s3 + $0x20] sm:$0xff]
        %v495 = vld [vmem:[%s3 + $0x28] sm:$0xff]
        %v496 = vld [vmem:[%s3 + $0x30] sm:$0xff]
        %v497 = vld [vmem:[%s3 + $0x38] sm:$0xff]
        %v499 = vsel %vm378, %v458, 0
        %v502 = vsel %vm378, %v463, 0
        %v505 = vsel %vm378, %v468, 0
        %v508 = vsel %vm378, %v473, 0
        %510 = vmatprep.subr.mxu0 0.0
        %511 = vmatpush1.msra.mxu0 %v494
        %512 = vmatprep.subr.mxu0 0.0
        %513 = vmatpush1.msra.mxu0 %v495
        %514 = vmatprep.subr.mxu0 0.0
        %515 = vmatpush1.msra.mxu0 %v496
        %516 = vmatprep.subr.mxu0 0.0
        %517 = vmatpush1.msra.mxu0 %v497
        %518 = vmatprep.subr.mxu0 0.0
        %519 = vmatpush1.msra.mxu0 0.0
        %520 = vmatprep.subr.mxu0 0.0
        %521 = vmatpush1.msra.mxu0 0.0
        %522 = vmatprep.subr.mxu0 0.0
        %523 = vmatpush1.msra.mxu0 0.0
        %524 = vmatprep.subr.mxu0 0.0
        %525 = vmatpush1.msra.mxu0 0.0
        %526 = vmatprep.subr.mxu0 0.0
        %527 = vmatpush1.msra.mxu0 0.0
        %528 = vmatprep.subr.mxu0 0.0
        %529 = vmatpush1.msra.mxu0 0.0
        %530 = vmatprep.subr.mxu0 0.0
        %531 = vmatpush1.msra.mxu0 0.0
        %532 = vmatprep.subr.mxu0 0.0
        %533 = vmatpush1.msra.mxu0 0.0
        %534 = vmatprep.subr.mxu0 0.0
        %535 = vmatpush1.msra.mxu0 0.0
        %536 = vmatprep.subr.mxu0 0.0
        %537 = vmatpush1.msra.mxu0 0.0
        %538 = vmatprep.subr.mxu0 0.0
        %539 = vmatpush1.msra.mxu0 0.0
        %540 = vmatprep.subr.mxu0 0.0
        %541 = vmatpush1.msra.mxu0 0.0
        %542 = vmatprep.subr.mxu0 0.0
        %543 = vmatpush1.msra.mxu0 0.0
        %544 = vmatprep.subr.mxu0 0.0
        %545 = vmatpush1.msra.mxu0 0.0
        %546 = vmatprep.subr.mxu0 0.0
        %547 = vmatpush1.msra.mxu0 0.0
        %548 = vmatprep.subr.mxu0 0.0
        %549 = vmatpush1.msra.mxu0 0.0
        %550 = vmatprep.subr.mxu0 0.0
        %551 = vmatpush1.msra.mxu0 0.0
        %552 = vmatprep.subr.mxu0 0.0
        %553 = vmatpush1.msra.mxu0 0.0
        %554 = vmatprep.subr.mxu0 0.0
        %555 = vmatpush1.msra.mxu0 0.0
        %556 = vmatprep.subr.mxu0 0.0
        %557 = vmatpush1.msra.mxu0 0.0
        %558 = vmatprep.subr.mxu0 0.0
        %559 = vmatpush1.msra.mxu0 0.0
        %560 = vmatprep.subr.mxu0 0.0
        %561 = vmatpush1.msra.mxu0 0.0
        %562 = vmatprep.subr.mxu0 0.0
        %563 = vmatpush1.msra.mxu0 0.0
        %564 = vmatprep.subr.mxu0 0.0
        %565 = vmatpush1.msra.mxu0 0.0
        %566 = vmatprep.subr.mxu0 0.0
        %567 = vmatpush1.msra.mxu0 0.0
        %568 = vmatprep.subr.mxu0 0.0
        %569 = vmatpush1.msra.mxu0 0.0
        %570 = vmatprep.subr.mxu0 0.0
        %571 = vmatpush1.msra.mxu0 0.0
        %572 = vmatprep.subr.mxu0 0.0
        %573 = vmatpush1.msra.mxu0 0.0
        %574 = vmatprep.mubr.f32.mxu0 0.0
        %575 = vmatmul.mubr.f32.gmra.mrb[0].mxu0 %v499
        %v576 = vpop.f32.mrb[0].mxu0
        %v577 = vadd.f32 0.0, %v576
        %v578 = vpop.f32.mrb[0].mxu0
        %579 = vmatprep.mubr.f32.mxu0 0.0
        %580 = vmatmul.mubr.f32.gmra.mrb[0].mxu0 %v502
        %v581 = vpop.f32.mrb[0].mxu0
        %v582 = vadd.f32 0.0, %v581
        %v583 = vpop.f32.mrb[0].mxu0
        %584 = vmatprep.mubr.f32.mxu0 0.0
        %585 = vmatmul.mubr.f32.gmra.mrb[0].mxu0 %v505
        %v586 = vpop.f32.mrb[0].mxu0
        %v587 = vadd.f32 0.0, %v586
        %v588 = vpop.f32.mrb[0].mxu0
        %589 = vmatprep.mubr.f32.mxu0 0.0
        %590 = vmatmul.mubr.f32.gmra.mrb[0].mxu0 %v508
        %v591 = vpop.f32.mrb[0].mxu0
        %v592 = vadd.f32 0.0, %v591
        %v593 = vpop.f32.mrb[0].mxu0
        %594 = vdwg.mxu0
        %v595 = vld [vmem:[%s3] sm:$0xff]
        %v596 = vld [vmem:[%s3 + $0x8] sm:$0xff]
        %v597 = vld [vmem:[%s3 + $0x10] sm:$0xff]
        %v598 = vld [vmem:[%s3 + $0x18] sm:$0xff]
        %v599 = vlaneseq
        %v600 = vshrl.u32 %v599, 7
        %v601 = vsub.s32 0, %v600
        %v602 = vrot.slane %v257, %v601
        %vm605 = vcmask 1041409
        %v606 = vsel %vm605, %v493, %v484
        %v607 = vsel %vm378, %v606, 0
        %609 = vmatprep.subr.mxu0 0.0
        %610 = vmatpush1.msra.mxu0 %v595
        %611 = vmatprep.subr.mxu0 0.0
        %612 = vmatpush1.msra.mxu0 %v596
        %613 = vmatprep.subr.mxu0 0.0
        %614 = vmatpush1.msra.mxu0 %v597
        %615 = vmatprep.subr.mxu0 0.0
        %616 = vmatpush1.msra.mxu0 %v598
        %617 = vmatprep.subr.mxu0 0.0
        %618 = vmatpush1.msra.mxu0 0.0
        %619 = vmatprep.subr.mxu0 0.0
        %620 = vmatpush1.msra.mxu0 0.0
        %621 = vmatprep.subr.mxu0 0.0
        %622 = vmatpush1.msra.mxu0 0.0
        %623 = vmatprep.subr.mxu0 0.0
        %624 = vmatpush1.msra.mxu0 0.0
        %625 = vmatprep.subr.mxu0 0.0
        %626 = vmatpush1.msra.mxu0 0.0
        %627 = vmatprep.subr.mxu0 0.0
        %628 = vmatpush1.msra.mxu0 0.0
        %629 = vmatprep.subr.mxu0 0.0
        %630 = vmatpush1.msra.mxu0 0.0
        %631 = vmatprep.subr.mxu0 0.0
        %632 = vmatpush1.msra.mxu0 0.0
        %633 = vmatprep.subr.mxu0 0.0
        %634 = vmatpush1.msra.mxu0 0.0
        %635 = vmatprep.subr.mxu0 0.0
        %636 = vmatpush1.msra.mxu0 0.0
        %637 = vmatprep.subr.mxu0 0.0
        %638 = vmatpush1.msra.mxu0 0.0
        %639 = vmatprep.subr.mxu0 0.0
        %640 = vmatpush1.msra.mxu0 0.0
        %641 = vmatprep.subr.mxu0 0.0
        %642 = vmatpush1.msra.mxu0 0.0
        %643 = vmatprep.subr.mxu0 0.0
        %644 = vmatpush1.msra.mxu0 0.0
        %645 = vmatprep.subr.mxu0 0.0
        %646 = vmatpush1.msra.mxu0 0.0
        %647 = vmatprep.subr.mxu0 0.0
        %648 = vmatpush1.msra.mxu0 0.0
        %649 = vmatprep.subr.mxu0 0.0
        %650 = vmatpush1.msra.mxu0 0.0
        %651 = vmatprep.subr.mxu0 0.0
        %652 = vmatpush1.msra.mxu0 0.0
        %653 = vmatprep.subr.mxu0 0.0
        %654 = vmatpush1.msra.mxu0 0.0
        %655 = vmatprep.subr.mxu0 0.0
        %656 = vmatpush1.msra.mxu0 0.0
        %657 = vmatprep.subr.mxu0 0.0
        %658 = vmatpush1.msra.mxu0 0.0
        %659 = vmatprep.subr.mxu0 0.0
        %660 = vmatpush1.msra.mxu0 0.0
        %661 = vmatprep.subr.mxu0 0.0
        %662 = vmatpush1.msra.mxu0 0.0
        %663 = vmatprep.subr.mxu0 0.0
        %664 = vmatpush1.msra.mxu0 0.0
        %665 = vmatprep.subr.mxu0 0.0
        %666 = vmatpush1.msra.mxu0 0.0
        %667 = vmatprep.subr.mxu0 0.0
        %668 = vmatpush1.msra.mxu0 0.0
        %669 = vmatprep.subr.mxu0 0.0
        %670 = vmatpush1.msra.mxu0 0.0
        %671 = vmatprep.subr.mxu0 0.0
        %672 = vmatpush1.msra.mxu0 0.0
        %673 = vmatprep.mubr.f32.mxu0 0.0
        %674 = vmatmul.mubr.f32.gmra.mrb[0].mxu0 %v607
        %v675 = vpop.f32.mrb[0].mxu0
        %v676 = vadd.f32 %v602, %v675
        %v677 = vpop.f32.mrb[0].mxu0
        %678 = vdwg.mxu0
        %v681 = vunpack.c.l.s4 1966171168
        %v682 = vunpack.c.0.s8 %v681
        %v683 = vlaneseq
        %v684 = vshrl.u32 %v683, 7
        %v685 = vsub.s32 %v682, %v684
        %v686 = vrot.slane %v676, %v685
        %v687 = vcombine.high %v686, %v686
        %v689 = vunpack.c.l.s4 1966171168
        %v690 = vunpack.c.0.s8 %v689
        %v691 = vlaneseq
        %v692 = vshrl.u32 %v691, 7
        %v693 = vsub.s32 %v690, %v692
        %v694 = vrot.slane %v686, %v693
        %v696 = vunpack.c.l.s4 1966171168
        %v697 = vunpack.c.0.s8 %v696
        %v698 = vlaneseq
        %v699 = vshrl.u32 %v698, 7
        %v700 = vsub.s32 %v697, %v699
        %v701 = vrot.slane %v687, %v700
        %v702 = vlaneseq
        %v703 = vshrl.u32 %v702, 7
        %v704 = vsub.s32 0, %v703
        %v705 = vrot.slane %v694, %v704
        %v706 = vlaneseq
        %v707 = vshrl.u32 %v706, 7
        %v708 = vsub.s32 0, %v707
        %v709 = vrot.slane %v701, %v708
        %v712 = vadd.f32 %v577, %v705
        %v713 = vadd.f32 %v582, %v705
        %v714 = vadd.f32 %v587, %v709
        %v715 = vadd.f32 %v592, %v709
        %v716 = vmax.f32 %v712, 0.0
        %v717 = vmax.f32 %v713, 0.0
        %v718 = vmax.f32 %v714, 0.0
        %v719 = vmax.f32 %v715, 0.0
        %v720 = vld [vmem:[%s4] sm:$0xff]
        %v721 = vld [vmem:[%s4 + $0x8] sm:$0xff]
        %v722 = vld [vmem:[%s4 + $0x10] sm:$0xff]
        %v723 = vld [vmem:[%s4 + $0x18] sm:$0xff]
        %v724 = vld [vmem:[%s4 + $0x20] sm:$0xff]
        %v725 = vld [vmem:[%s4 + $0x28] sm:$0xff]
        %v726 = vld [vmem:[%s4 + $0x30] sm:$0xff]
        %v727 = vld [vmem:[%s4 + $0x38] sm:$0xff]
        %v728 = vlaneseq
        %v729 = vshrl.u32 %v728, 7
        %v730 = vsub.s32 0, %v729
        %v731 = vrot.slane %v258, %v730
        %vm732 = vcmask 523264
        %v734 = vsel %vm732, %v716, 0
        %v737 = vsel %vm732, %v717, 0
        %v740 = vsel %vm732, %v718, 0
        %v743 = vsel %vm732, %v719, 0
        %745 = vmatprep.subr.mxu0 0.0
        %746 = vmatpush1.msra.mxu0 %v720
        %747 = vmatprep.subr.mxu0 0.0
        %748 = vmatpush1.msra.mxu0 %v721
        %749 = vmatprep.subr.mxu0 0.0
        %750 = vmatpush1.msra.mxu0 %v722
        %751 = vmatprep.subr.mxu0 0.0
        %752 = vmatpush1.msra.mxu0 %v723
        %753 = vmatprep.subr.mxu0 0.0
        %754 = vmatpush1.msra.mxu0 %v724
        %755 = vmatprep.subr.mxu0 0.0
        %756 = vmatpush1.msra.mxu0 %v725
        %757 = vmatprep.subr.mxu0 0.0
        %758 = vmatpush1.msra.mxu0 %v726
        %759 = vmatprep.subr.mxu0 0.0
        %760 = vmatpush1.msra.mxu0 %v727
        %761 = vmatprep.subr.mxu0 0.0
        %762 = vmatpush1.msra.mxu0 0.0
        %763 = vmatprep.subr.mxu0 0.0
        %764 = vmatpush1.msra.mxu0 0.0
        %765 = vmatprep.subr.mxu0 0.0
        %766 = vmatpush1.msra.mxu0 0.0
        %767 = vmatprep.subr.mxu0 0.0
        %768 = vmatpush1.msra.mxu0 0.0
        %769 = vmatprep.subr.mxu0 0.0
        %770 = vmatpush1.msra.mxu0 0.0
        %771 = vmatprep.subr.mxu0 0.0
        %772 = vmatpush1.msra.mxu0 0.0
        %773 = vmatprep.subr.mxu0 0.0
        %774 = vmatpush1.msra.mxu0 0.0
        %775 = vmatprep.subr.mxu0 0.0
        %776 = vmatpush1.msra.mxu0 0.0
        %777 = vmatprep.subr.mxu0 0.0
        %778 = vmatpush1.msra.mxu0 0.0
        %779 = vmatprep.subr.mxu0 0.0
        %780 = vmatpush1.msra.mxu0 0.0
        %781 = vmatprep.subr.mxu0 0.0
        %782 = vmatpush1.msra.mxu0 0.0
        %783 = vmatprep.subr.mxu0 0.0
        %784 = vmatpush1.msra.mxu0 0.0
        %785 = vmatprep.subr.mxu0 0.0
        %786 = vmatpush1.msra.mxu0 0.0
        %787 = vmatprep.subr.mxu0 0.0
        %788 = vmatpush1.msra.mxu0 0.0
        %789 = vmatprep.subr.mxu0 0.0
        %790 = vmatpush1.msra.mxu0 0.0
        %791 = vmatprep.subr.mxu0 0.0
        %792 = vmatpush1.msra.mxu0 0.0
        %793 = vmatprep.subr.mxu0 0.0
        %794 = vmatpush1.msra.mxu0 0.0
        %795 = vmatprep.subr.mxu0 0.0
        %796 = vmatpush1.msra.mxu0 0.0
        %797 = vmatprep.subr.mxu0 0.0
        %798 = vmatpush1.msra.mxu0 0.0
        %799 = vmatprep.subr.mxu0 0.0
        %800 = vmatpush1.msra.mxu0 0.0
        %801 = vmatprep.subr.mxu0 0.0
        %802 = vmatpush1.msra.mxu0 0.0
        %803 = vmatprep.subr.mxu0 0.0
        %804 = vmatpush1.msra.mxu0 0.0
        %805 = vmatprep.subr.mxu0 0.0
        %806 = vmatpush1.msra.mxu0 0.0
        %807 = vmatprep.subr.mxu0 0.0
        %808 = vmatpush1.msra.mxu0 0.0
        %809 = vmatprep.mubr.f32.mxu0 0.0
        %810 = vmatmul.mubr.f32.gmra.mrb[0].mxu0 %v734
        %v811 = vpop.f32.mrb[0].mxu0
        %v812 = vadd.f32 %v731, %v811
        %v813 = vpop.f32.mrb[0].mxu0
        %814 = vmatprep.mubr.f32.mxu0 0.0
        %815 = vmatmul.mubr.f32.gmra.mrb[0].mxu0 %v737
        %v816 = vpop.f32.mrb[0].mxu0
        %v817 = vadd.f32 %v731, %v816
        %v818 = vpop.f32.mrb[0].mxu0
        %819 = vmatprep.mubr.f32.mxu0 0.0
        %820 = vmatmul.mubr.f32.gmra.mrb[0].mxu0 %v740
        %v821 = vpop.f32.mrb[0].mxu0
        %v822 = vadd.f32 %v731, %v821
        %v823 = vpop.f32.mrb[0].mxu0
        %824 = vmatprep.mubr.f32.mxu0 0.0
        %825 = vmatmul.mubr.f32.gmra.mrb[0].mxu0 %v743
        %v826 = vpop.f32.mrb[0].mxu0
        %v827 = vadd.f32 %v731, %v826
        %v828 = vpop.f32.mrb[0].mxu0
        %829 = vdwg.mxu0
        %830 = vst.msk [vmem:[%s247] sm:$0xff] %vm378, %v812
        %831 = vst.msk [vmem:[%s247 + $0x8] sm:$0xff] %vm378, %v817
        %832 = vst.msk [vmem:[%s247 + $0x10] sm:$0xff] %vm378, %v822
        %833 = vst.msk [vmem:[%s247 + $0x18] sm:$0xff] %vm378, %v827
        %s834 = sand.u32 %s159, 1
        %s835 = scalar_lea.sflag [#allocation3], %s834
        %s836 = sand.u32 %s159, 1
        %s837 = smul.addr %s836, 32
        %s838 = scalar_lea.vmem [#allocation2], %s837
        // Predicated region
        $region45: #{tpu_custom_call.1} parent=43 // pred_check
          %p839 = pneg %p169
        $region46: #{tpu_custom_call.1} parent=43 // pred_check_branch
          %841 = sbr.rel (%p839) target = $region48
        $region47: #{tpu_custom_call.1} parent=43 // pred_region
          %s842 = smul.u32 2, %s20
          %s844 = ssub.s32 512, 512
          %845 = vsyncadd %s835, %s844
          %s846 = smul.addr %s842, 2
          %s847 = smul.addr %s846, 128
          %s848 = scalar_lea.hbm %s6, %s847
          %s849 = sshll.u32 %s838, 4
          %s850 = int_to_ptr.vmem [resolvable:$true] %s849
          %855 = dma.vmem_to_hbm [thread:$0]  %s850, 512, %s848, %s835, 128, 128, 8
        $region48: #{tpu_custom_call.1} parent=43 // pred_fallthru
          _
      $region44: #{tpu_custom_call.1} parent=5 // pred_fallthru
        _
      %p856 = scmp.le.s32.totalorder 2, %s15
      // Predicated region
      $region49: #{tpu_custom_call.1} parent=5 // pred_check
        %p857 = pneg %p856
      $region50: #{tpu_custom_call.1} parent=5 // pred_check_branch
        %859 = sbr.rel (%p857) target = $region52
      $region51: #{tpu_custom_call.1} parent=5 // pred_region
        %s860 = ssub.s32 %s15, 2
        // Predicated region
        $region53: #{tpu_custom_call.1} parent=51 // pred_check
          %p861 = pneg %p175
        $region54: #{tpu_custom_call.1} parent=51 // pred_check_branch
          %863 = sbr.rel (%p861) target = $region56
        $region55: #{tpu_custom_call.1} parent=51 // pred_region
          %s864 = sand.u32 %s160, 1
          %s865 = scalar_lea.sflag [#allocation3], %s864
          %s866 = sand.u32 %s160, 1
          %s867 = smul.addr %s866, 32
          %s868 = scalar_lea.vmem [#allocation2], %s867
          %869 = dma.done %s865, 512
        $region56: #{tpu_custom_call.1} parent=51 // pred_fallthru
          _
      $region52: #{tpu_custom_call.1} parent=5 // pred_fallthru
        _
    $region6: #{tpu_custom_call.1} parent=1 // loop_footer
      %s19 = sadd.s32 1, %s15
    $region7: #{tpu_custom_call.1} parent=1 // loop_footer_branch
      %14 = sbr.rel target = $region3
    $region8: #{tpu_custom_call.1} parent=1 // loop_exit
      _
    %870 = vsyncpa [#allocation3], 1
    %s871 = scalar_lea.sflag [#allocation3], 1
    %872 = vsyncpa %s871, 1

</llo_original>
